<compile_context>
chip_gen: v5e
topology: v5e:2x2
jax: 0.10.0
libtpu: 0.0.40
codegen_flags: <defaults>
</compile_context>

<pallas_src>
import jax
import jax.numpy as jnp
from jax.experimental import pallas as pl
from jax.experimental.pallas import tpu as pltpu

LANE = 128
SUBLANE = 8


def _round_up(n, m):
    return ((n + m - 1) // m) * m


def dqn_specific_kernel(x_ref, w1_ref, b1_ref, w2_ref, b2_ref, w3_ref, b3_ref,
                        out_ref):
    compute_dtype = w1_ref.dtype  # bf16 or f32 operands; accumulation is f32.

    # layer1 + ReLU   (bias add / ReLU / softmax epilogue all in f32)
    x = x_ref[...].astype(compute_dtype)
    h1 = jnp.dot(x, w1_ref[...], preferred_element_type=jnp.float32) + b1_ref[...]
    h1 = jnp.maximum(h1, 0.0)

    # layer2 + ReLU
    h2 = jnp.dot(h1.astype(compute_dtype), w2_ref[...],
                 preferred_element_type=jnp.float32) + b2_ref[...]
    h2 = jnp.maximum(h2, 0.0)

    # layer3_spe (logits over the real, unpadded action width)
    logits = jnp.dot(h2.astype(compute_dtype), w3_ref[...],
                     preferred_element_type=jnp.float32) + b3_ref[...]

    # softmax over the action axis (dim=1 of the (batch, actions) layout).
    # Exact divide so rows sum to 1 (approx reciprocal was not tight enough).
    m = jnp.max(logits, axis=-1, keepdims=True)
    e = jnp.exp(logits - m)
    denom = jnp.sum(e, axis=-1, keepdims=True)
    out_ref[...] = (e / denom).astype(out_ref.dtype)


def init_params(key, n_observations, n_spe_actions, hidden_size):
    """PyTorch nn.Linear-style init: U(-1/sqrt(fan_in), 1/sqrt(fan_in))."""
    keys = jax.random.split(key, 6)

    def linear(kw, kb, fan_in, fan_out):
        bound = 1.0 / jnp.sqrt(jnp.float32(fan_in))
        w = jax.random.uniform(kw, (fan_in, fan_out), jnp.float32, -bound, bound)
        b = jax.random.uniform(kb, (1, fan_out), jnp.float32, -bound, bound)
        return w, b

    w1, b1 = linear(keys[0], keys[1], n_observations, hidden_size)
    w2, b2 = linear(keys[2], keys[3], hidden_size, hidden_size)
    w3, b3 = linear(keys[4], keys[5], hidden_size, n_spe_actions)
    return {"W1": w1, "b1": b1, "W2": w2, "b2": b2, "W3": w3, "b3": b3}


def prepare_params(params, compute_dtype=jnp.float32):
    """One-time hidden-dim padding (to a multiple of 128 lanes) + optional cast.

    Only the hidden dimension is padded; n_observations and n_spe_actions stay
    at their real widths.  Padded hidden weight rows/cols and bias lanes are
    zero, so ReLU(0 + 0) = 0 in the padded hidden lanes contributes nothing
    downstream.  Weights may be cast to bf16 (good on v5e/v6e/v7x alike: MXU
    takes bf16 with f32 accumulation); biases stay f32 (epilogue is f32).
    """
    n_obs, hidden = params["W1"].shape
    n_act = params["W3"].shape[1]
    hid_p = _round_up(hidden, LANE)

    def pad_w(w, rows, cols):
        w = w.astype(compute_dtype)
        return jnp.pad(w, ((0, rows - w.shape[0]), (0, cols - w.shape[1])))

    def pad_b(b, cols):
        b = b.astype(jnp.float32)
        return jnp.pad(b, ((0, 0), (0, cols - b.shape[1])))

    return {
        "W1": pad_w(params["W1"], n_obs, hid_p),
        "b1": pad_b(params["b1"], hid_p),
        "W2": pad_w(params["W2"], hid_p, hid_p),
        "b2": pad_b(params["b2"], hid_p),
        "W3": pad_w(params["W3"], hid_p, n_act),
        "b3": pad_b(params["b3"], n_act),
        "n_observations": n_obs,
        "n_spe_actions": n_act,
    }


def dqn_specific_forward(x, prepared, *, batch_tile=1024):
    """x: (batch, n_observations). prepared: output of prepare_params."""
    w1, b1, w2, b2, w3, b3 = (prepared[k] for k in ("W1", "b1", "W2", "b2", "W3", "b3"))
    n_obs = prepared["n_observations"]
    n_act = prepared["n_spe_actions"]
    compute_dtype = w1.dtype
    hid_p = w1.shape[1]

    batch = x.shape[0]
    assert x.shape[1] == n_obs

    # Batch tile: multiple of 8 sublanes, capped at batch_tile (tiles this size
    # are well under the default scoped-VMEM limit on every generation).
    rounded = _round_up(batch, SUBLANE)
    tb = min(batch_tile, rounded)
    # v7x megacore: with more than one sublane-row of work, guarantee >= 2 grid
    # steps so the ("parallel",) axis actually splits across both TensorCores.
    if rounded > SUBLANE:
        tb = min(tb, _round_up(pl.cdiv(rounded, 2), SUBLANE))
    padded_batch = _round_up(batch, tb)

    # Only batch rows get zero-padded; feature width stays real, so the kernel
    # streams exactly the bytes the model needs.  No copy when nothing changes.
    if padded_batch != batch:
        x = jnp.pad(x, ((0, padded_batch - batch), (0, 0)))
    if x.dtype != compute_dtype:
        x = x.astype(compute_dtype)

    const = lambda i: (0, 0)  # weights/biases: same block every step -> VMEM-resident

    out = pl.pallas_call(
        dqn_specific_kernel,
        out_shape=jax.ShapeDtypeStruct((padded_batch, n_act), jnp.float32),
        grid=(padded_batch // tb,),
        in_specs=[
            pl.BlockSpec((tb, n_obs), lambda i: (i, 0)),   # x streams per batch tile
            pl.BlockSpec((n_obs, hid_p), const),
            pl.BlockSpec((1, hid_p), const),
            pl.BlockSpec((hid_p, hid_p), const),
            pl.BlockSpec((1, hid_p), const),
            pl.BlockSpec((hid_p, n_act), const),
            pl.BlockSpec((1, n_act), const),
        ],
        out_specs=pl.BlockSpec((tb, n_act), lambda i: (i, 0)),
        compiler_params=pltpu.CompilerParams(
            dimension_semantics=("parallel",)),
    )(x, w1, b1, w2, b2, w3, b3)

    if padded_batch != batch:
        out = out[:batch]
    return out


def _reference(x, params):
    h1 = jnp.maximum(x @ params["W1"] + params["b1"], 0.0)
    h2 = jnp.maximum(h1 @ params["W2"] + params["b2"], 0.0)
    logits = h2 @ params["W3"] + params["b3"]
    return jax.nn.softmax(logits, axis=1)


if __name__ == "__main__":
    key = jax.random.PRNGKey(0)
    k_x, k_x2, k_p = jax.random.split(key, 3)

    batch = 8
    n_observations = 32
    hidden_size = 64          # DQN_HIDDEN_SIZE (synthetic)
    n_spe_actions = 16

    x = jax.random.normal(k_x, (batch, n_observations), jnp.float32)
    params = init_params(k_p, n_observations, n_spe_actions, hidden_size)
    ref = _reference(x, params)

    # --- f32 path (matches PyTorch semantics; exact softmax normalization) ---
    prep_f32 = prepare_params(params, compute_dtype=jnp.float32)
    out = jax.block_until_ready(dqn_specific_forward(x, prep_f32))
    assert out.shape == (batch, n_spe_actions)
    assert jnp.allclose(out, ref, atol=2e-3, rtol=2e-3)
    assert jnp.allclose(jnp.sum(out, axis=1), 1.0, atol=1e-3)

    # --- multi-step grid + batch-row padding (batch=13 -> tb=8, 2 grid steps) ---
    x_odd = jax.random.normal(k_x2, (13, n_observations), jnp.float32)
    out_odd = jax.block_until_ready(dqn_specific_forward(x_odd, prep_f32))
    ref_odd = _reference(x_odd, params)
    assert out_odd.shape == (13, n_spe_actions)
    assert jnp.allclose(out_odd, ref_odd, atol=2e-3, rtol=2e-3)
    assert jnp.allclose(jnp.sum(out_odd, axis=1), 1.0, atol=1e-3)

    # --- bf16 matmul operands, f32 accumulate/epilogue (good on v5e/v6e/v7x) ---
    prep_bf16 = prepare_params(params, compute_dtype=jnp.bfloat16)
    out_bf16 = jax.block_until_ready(dqn_specific_forward(x, prep_bf16))
    assert jnp.allclose(out_bf16, ref, atol=5e-2)
    assert jnp.allclose(jnp.sum(out_bf16, axis=1), 1.0, atol=1e-3)

    print("KERNEL_OK")
</pallas_src>

<mosaic_0001>
module attributes {stable_mosaic.version = 11 : i64} {
  func.func @dqn_specific_kernel(%arg0: i32, %arg1: memref<8x32xf32, #tpu.memory_space<vmem>>, %arg2: memref<32x128xf32, #tpu.memory_space<vmem>>, %arg3: memref<1x128xf32, #tpu.memory_space<vmem>>, %arg4: memref<128x128xf32, #tpu.memory_space<vmem>>, %arg5: memref<1x128xf32, #tpu.memory_space<vmem>>, %arg6: memref<128x16xf32, #tpu.memory_space<vmem>>, %arg7: memref<1x16xf32, #tpu.memory_space<vmem>>, %arg8: memref<8x16xf32, #tpu.memory_space<vmem>>) attributes {dimension_semantics = [#tpu.dimension_semantics<parallel>], iteration_bounds = array<i64: 1>, scalar_prefetch = 0 : i64, scratch_operands = 0 : i64, tpu.core_type = #tpu.core_type<tc>, window_params = [{transform_indices = @transform_0, window_bounds = array<i64: 8, 32>}, {pipeline_mode = #tpu.pipeline_mode<synchronous>, transform_indices = @transform_1, window_bounds = array<i64: 32, 128>}, {pipeline_mode = #tpu.pipeline_mode<synchronous>, transform_indices = @transform_2, window_bounds = array<i64: 1, 128>}, {pipeline_mode = #tpu.pipeline_mode<synchronous>, transform_indices = @transform_3, window_bounds = array<i64: 128, 128>}, {pipeline_mode = #tpu.pipeline_mode<synchronous>, transform_indices = @transform_4, window_bounds = array<i64: 1, 128>}, {pipeline_mode = #tpu.pipeline_mode<synchronous>, transform_indices = @transform_5, window_bounds = array<i64: 128, 16>}, {pipeline_mode = #tpu.pipeline_mode<synchronous>, transform_indices = @transform_6, window_bounds = array<i64: 1, 16>}, {transform_indices = @transform_7, window_bounds = array<i64: 8, 16>}]} {
    %c0 = arith.constant 0 : index
    %c0_0 = arith.constant 0 : index
    %0 = vector.load %arg1[%c0, %c0_0] : memref<8x32xf32, #tpu.memory_space<vmem>>, vector<8x32xf32>
    %c0_1 = arith.constant 0 : index
    %c0_2 = arith.constant 0 : index
    %1 = vector.load %arg2[%c0_1, %c0_2] : memref<32x128xf32, #tpu.memory_space<vmem>>, vector<32x128xf32>
    %cst = arith.constant dense<0.000000e+00> : vector<8x128xf32>
    %2 = tpu.matmul %0, %1, %cst {dimension_numbers = #tpu.dot_dimension_numbers<[1], [0], [0], [1], [0, 0, 1, 1], [], []>} : vector<8x32xf32>, vector<32x128xf32>, vector<8x128xf32> -> vector<8x128xf32>
    %c0_3 = arith.constant 0 : index
    %c0_4 = arith.constant 0 : index
    %3 = vector.load %arg3[%c0_3, %c0_4] : memref<1x128xf32, #tpu.memory_space<vmem>>, vector<1x128xf32>
    %4 = vector.broadcast %3 : vector<1x128xf32> to vector<8x128xf32>
    %5 = arith.addf %2, %4 : vector<8x128xf32>
    %cst_5 = arith.constant 0.000000e+00 : f32
    %6 = vector.broadcast %cst_5 : f32 to vector<8x128xf32>
    %7 = arith.maximumf %5, %6 : vector<8x128xf32>
    %c0_6 = arith.constant 0 : index
    %c0_7 = arith.constant 0 : index
    %8 = vector.load %arg4[%c0_6, %c0_7] : memref<128x128xf32, #tpu.memory_space<vmem>>, vector<128x128xf32>
    %cst_8 = arith.constant dense<0.000000e+00> : vector<8x128xf32>
    %9 = tpu.matmul %7, %8, %cst_8 {dimension_numbers = #tpu.dot_dimension_numbers<[1], [0], [0], [1], [0, 0, 1, 1], [], []>} : vector<8x128xf32>, vector<128x128xf32>, vector<8x128xf32> -> vector<8x128xf32>
    %c0_9 = arith.constant 0 : index
    %c0_10 = arith.constant 0 : index
    %10 = vector.load %arg5[%c0_9, %c0_10] : memref<1x128xf32, #tpu.memory_space<vmem>>, vector<1x128xf32>
    %11 = vector.broadcast %10 : vector<1x128xf32> to vector<8x128xf32>
    %12 = arith.addf %9, %11 : vector<8x128xf32>
    %cst_11 = arith.constant 0.000000e+00 : f32
    %13 = vector.broadcast %cst_11 : f32 to vector<8x128xf32>
    %14 = arith.maximumf %12, %13 : vector<8x128xf32>
    %c0_12 = arith.constant 0 : index
    %c0_13 = arith.constant 0 : index
    %15 = vector.load %arg6[%c0_12, %c0_13] : memref<128x16xf32, #tpu.memory_space<vmem>>, vector<128x16xf32>
    %cst_14 = arith.constant dense<0.000000e+00> : vector<8x16xf32>
    %16 = tpu.matmul %14, %15, %cst_14 {dimension_numbers = #tpu.dot_dimension_numbers<[1], [0], [0], [1], [0, 0, 1, 1], [], []>} : vector<8x128xf32>, vector<128x16xf32>, vector<8x16xf32> -> vector<8x16xf32>
    %c0_15 = arith.constant 0 : index
    %c0_16 = arith.constant 0 : index
    %17 = vector.load %arg7[%c0_15, %c0_16] : memref<1x16xf32, #tpu.memory_space<vmem>>, vector<1x16xf32>
    %18 = vector.broadcast %17 : vector<1x16xf32> to vector<8x16xf32>
    %19 = arith.addf %16, %18 : vector<8x16xf32>
    %cst_17 = arith.constant dense<0xFF800000> : vector<8xf32>
    %20 = vector.multi_reduction <maximumf>, %19, %cst_17 [1] : vector<8x16xf32> to vector<8xf32>
    %21 = vector.shape_cast %20 : vector<8xf32> to vector<8x1xf32>
    %22 = vector.broadcast %21 : vector<8x1xf32> to vector<8x16xf32>
    %23 = arith.subf %19, %22 : vector<8x16xf32>
    %24 = math.exp %23 : vector<8x16xf32>
    %cst_18 = arith.constant dense<0.000000e+00> : vector<8xf32>
    %25 = vector.multi_reduction <add>, %24, %cst_18 [1] : vector<8x16xf32> to vector<8xf32>
    %26 = vector.shape_cast %25 : vector<8xf32> to vector<8x1xf32>
    %27 = vector.broadcast %26 : vector<8x1xf32> to vector<8x16xf32>
    %28 = arith.divf %24, %27 : vector<8x16xf32>
    %c0_19 = arith.constant 0 : index
    %c0_20 = arith.constant 0 : index
    %29 = vector.load %arg8[%c0_19, %c0_20] : memref<8x16xf32, #tpu.memory_space<vmem>>, vector<8x16xf32>
    tpu.vector_store %arg8[%c0_19, %c0_20], %28 {strides = array<i32>} : memref<8x16xf32, #tpu.memory_space<vmem>>, vector<8x16xf32>,
    return
  }
  func.func @transform_0(%arg0: i32) -> (i32, i32) {
    %c0_i32 = arith.constant 0 : i32
    %c0_i32_0 = arith.constant 0 : i32
    return %arg0, %c0_i32 : i32, i32
  }
  func.func @transform_1(%arg0: i32) -> (i32, i32) {
    %c0_i32 = arith.constant 0 : i32
    %c0_i32_0 = arith.constant 0 : i32
    %c0_i32_1 = arith.constant 0 : i32
    return %c0_i32, %c0_i32_0 : i32, i32
  }
  func.func @transform_2(%arg0: i32) -> (i32, i32) {
    %c0_i32 = arith.constant 0 : i32
    %c0_i32_0 = arith.constant 0 : i32
    %c0_i32_1 = arith.constant 0 : i32
    return %c0_i32, %c0_i32_0 : i32, i32
  }
  func.func @transform_3(%arg0: i32) -> (i32, i32) {
    %c0_i32 = arith.constant 0 : i32
    %c0_i32_0 = arith.constant 0 : i32
    %c0_i32_1 = arith.constant 0 : i32
    return %c0_i32, %c0_i32_0 : i32, i32
  }
  func.func @transform_4(%arg0: i32) -> (i32, i32) {
    %c0_i32 = arith.constant 0 : i32
    %c0_i32_0 = arith.constant 0 : i32
    %c0_i32_1 = arith.constant 0 : i32
    return %c0_i32, %c0_i32_0 : i32, i32
  }
  func.func @transform_5(%arg0: i32) -> (i32, i32) {
    %c0_i32 = arith.constant 0 : i32
    %c0_i32_0 = arith.constant 0 : i32
    %c0_i32_1 = arith.constant 0 : i32
    return %c0_i32, %c0_i32_0 : i32, i32
  }
  func.func @transform_6(%arg0: i32) -> (i32, i32) {
    %c0_i32 = arith.constant 0 : i32
    %c0_i32_0 = arith.constant 0 : i32
    %c0_i32_1 = arith.constant 0 : i32
    return %c0_i32, %c0_i32_0 : i32, i32
  }
  func.func @transform_7(%arg0: i32) -> (i32, i32) {
    %c0_i32 = arith.constant 0 : i32
    %c0_i32_0 = arith.constant 0 : i32
    return %arg0, %c0_i32 : i32, i32
  }
}

</mosaic_0001>

<llo_original>
// kernel: tpu_custom_call.1
$region0: #{tpu_custom_call.1}
  #allocation0 [shape = 'u32[]', space=smem, size = 0x4, offset = 0x4, fixed_abs, tag = 'smem constant byte address 0x4 - core index']
  #allocation1 [shape = 'u32[72,128]{1,0:T(1,128)}', space=vmem, size = 0x9000, scoped, tag = 'internal scratch']
  %s0 = inlined_call_operand.vmem [shape: f32[8,32], index: 0, kind: input, shape index: {}]
  %s1 = inlined_call_operand.hbm [shape: f32[32,128], index: 1, kind: input, shape index: {}]
  %s2 = inlined_call_operand.vmem [shape: f32[1,128], index: 2, kind: input, shape index: {}]
  %s3 = inlined_call_operand.vmem [shape: f32[128,128], index: 3, kind: input, shape index: {}]
  %s4 = inlined_call_operand.vmem [shape: f32[1,128], index: 4, kind: input, shape index: {}]
  %s5 = inlined_call_operand.vmem [shape: f32[128,16], index: 5, kind: input, shape index: {}]
  %s6 = inlined_call_operand.vmem [shape: f32[1,16], index: 6, kind: input, shape index: {}]
  %s7 = inlined_call_operand.hbm [shape: f32[8,16], index: 7, kind: output, shape index: {}]
  %s8 = sld [smem:[#allocation0]]
  $region42: #{tpu_custom_call.1} parent=0
    _
  %s10 = ssub.s32 1, %s8
  %s11 = scalar_select 0, %s10, %s8
  $region1: #{tpu_custom_call.1} parent=0
    #allocation2 [shape = 'u8[16384]{0}', space=vmem, size = 0x4000, scoped, tag = 'input window, operand 1, single buffered']
    #allocation3 [shape = 's32[1]{0}', space=sflag, size = 0x4, scoped, tag = 'scoped memory for tpu_custom_call.1']
    #allocation4 [shape = 's32[1]{0}', space=sflag, size = 0x4, scoped, tag = 'scoped memory for tpu_custom_call.1']
    #allocation5 [shape = 'u8[4096]{0}', space=vmem, size = 0x1000, scoped, tag = 'output window, operand 0, single buffered']
    %12 = vsyncpa [#allocation3], 0
    %13 = vsyncpa [#allocation4], 0
    // Predicated region
    $region2: #{tpu_custom_call.1} parent=1 // pred_check
      _
    $region3: #{tpu_custom_call.1} parent=1 // pred_check_branch
      %15 = sbr.rel (0) target = $region5
    $region4: #{tpu_custom_call.1} parent=1 // pred_region
      _
    $region5: #{tpu_custom_call.1} parent=1 // pred_fallthru
      _
    // Predicated region
    $region6: #{tpu_custom_call.1} parent=1 // pred_check
      _
    $region7: #{tpu_custom_call.1} parent=1 // pred_check_branch
      %17 = sbr.rel (0) target = $region9
    $region8: #{tpu_custom_call.1} parent=1 // pred_region
      %19 = vsyncadd [#allocation3], 0
      %s20 = sshll.u32 %s1, 4
      %s21 = int_to_ptr.hbm [resolvable:$true] %s20
      %s22 = sshll.u32 [#allocation2], 4
      %s23 = int_to_ptr.vmem [resolvable:$true] %s22
      %28 = dma.hbm_to_vmem [thread:$0]  %s21, 512, %s23, [#allocation3], 128, 128, 8
    $region9: #{tpu_custom_call.1} parent=1 // pred_fallthru
      _
    // Predicated region
    $region10: #{tpu_custom_call.1} parent=1 // pred_check
      _
    $region11: #{tpu_custom_call.1} parent=1 // pred_check_branch
      %30 = sbr.rel (0) target = $region13
    $region12: #{tpu_custom_call.1} parent=1 // pred_region
      _
    $region13: #{tpu_custom_call.1} parent=1 // pred_fallthru
      _
    // Predicated region
    $region14: #{tpu_custom_call.1} parent=1 // pred_check
      _
    $region15: #{tpu_custom_call.1} parent=1 // pred_check_branch
      %32 = sbr.rel (0) target = $region17
    $region16: #{tpu_custom_call.1} parent=1 // pred_region
      _
    $region17: #{tpu_custom_call.1} parent=1 // pred_fallthru
      _
    // Predicated region
    $region18: #{tpu_custom_call.1} parent=1 // pred_check
      _
    $region19: #{tpu_custom_call.1} parent=1 // pred_check_branch
      %34 = sbr.rel (0) target = $region21
    $region20: #{tpu_custom_call.1} parent=1 // pred_region
      _
    $region21: #{tpu_custom_call.1} parent=1 // pred_fallthru
      _
    // Predicated region
    $region22: #{tpu_custom_call.1} parent=1 // pred_check
      _
    $region23: #{tpu_custom_call.1} parent=1 // pred_check_branch
      %36 = sbr.rel (0) target = $region25
    $region24: #{tpu_custom_call.1} parent=1 // pred_region
      _
    $region25: #{tpu_custom_call.1} parent=1 // pred_fallthru
      _
    // Predicated region
    $region26: #{tpu_custom_call.1} parent=1 // pred_check
      _
    $region27: #{tpu_custom_call.1} parent=1 // pred_check_branch
      %38 = sbr.rel (0) target = $region29
    $region28: #{tpu_custom_call.1} parent=1 // pred_region
      _
    $region29: #{tpu_custom_call.1} parent=1 // pred_fallthru
      _
    // Predicated region
    $region30: #{tpu_custom_call.1} parent=1 // pred_check
      _
    $region31: #{tpu_custom_call.1} parent=1 // pred_check_branch
      %40 = sbr.rel (0) target = $region33
    $region32: #{tpu_custom_call.1} parent=1 // pred_region
      %42 = dma.done [#allocation3], 512
    $region33: #{tpu_custom_call.1} parent=1 // pred_fallthru
      _
    %v43 = vld [vmem:[%s0] sm:$0xff]
    %v44 = vld [vmem:[#allocation2] sm:$0xff]
    %v45 = vld [vmem:[#allocation2 + $0x8] sm:$0xff]
    %v46 = vld [vmem:[#allocation2 + $0x10] sm:$0xff]
    %v47 = vld [vmem:[#allocation2 + $0x18] sm:$0xff]
    %v48 = vld [vmem:[%s2] sm:$0x1]
    %v50 = vperm.slane %v48, 0
    %vm52 = vcmask 261120
    %v54 = vsel %vm52, %v43, 0
    %56 = vmatpush.msra.mxu0 0.0
    %57 = vmatpush.msra.mxu0 0.0
    %58 = vmatpush.msra.mxu0 0.0
    %59 = vmatpush.msra.mxu0 0.0
    %60 = vmatpush.msra.mxu0 0.0
    %61 = vmatpush.msra.mxu0 0.0
    %62 = vmatpush.msra.mxu0 0.0
    %63 = vmatpush.msra.mxu0 0.0
    %64 = vmatpush.msra.mxu0 0.0
    %65 = vmatpush.msra.mxu0 0.0
    %66 = vmatpush.msra.mxu0 0.0
    %67 = vmatpush.msra.mxu0 0.0
    %68 = vmatpush.msra.mxu0 %v47
    %69 = vmatpush.msra.mxu0 %v46
    %70 = vmatpush.msra.mxu0 %v45
    %71 = vmatpush.msra.mxu0 %v44
    %72 = vmatmul.f32.gmra.mxu0 %v54
    %v73 = vpop.f32.mrf.mxu0
    %v74 = vadd.f32 %v50, %v73
    %75 = vdwg.mxu0
    %v76 = vmax.f32 %v74, 0.0
    %v77 = vld [vmem:[%s3] sm:$0xff]
    %v78 = vld [vmem:[%s3 + $0x8] sm:$0xff]
    %v79 = vld [vmem:[%s3 + $0x10] sm:$0xff]
    %v80 = vld [vmem:[%s3 + $0x18] sm:$0xff]
    %v81 = vld [vmem:[%s3 + $0x20] sm:$0xff]
    %v82 = vld [vmem:[%s3 + $0x28] sm:$0xff]
    %v83 = vld [vmem:[%s3 + $0x30] sm:$0xff]
    %v84 = vld [vmem:[%s3 + $0x38] sm:$0xff]
    %v85 = vld [vmem:[%s3 + $0x40] sm:$0xff]
    %v86 = vld [vmem:[%s3 + $0x48] sm:$0xff]
    %v87 = vld [vmem:[%s3 + $0x50] sm:$0xff]
    %v88 = vld [vmem:[%s3 + $0x58] sm:$0xff]
    %v89 = vld [vmem:[%s3 + $0x60] sm:$0xff]
    %v90 = vld [vmem:[%s3 + $0x68] sm:$0xff]
    %v91 = vld [vmem:[%s3 + $0x70] sm:$0xff]
    %v92 = vld [vmem:[%s3 + $0x78] sm:$0xff]
    %v93 = vld [vmem:[%s4] sm:$0x1]
    %v95 = vperm.slane %v93, 0
    %97 = vmatpush.msra.mxu0 %v92
    %98 = vmatpush.msra.mxu0 %v91
    %99 = vmatpush.msra.mxu0 %v90
    %100 = vmatpush.msra.mxu0 %v89
    %101 = vmatpush.msra.mxu0 %v88
    %102 = vmatpush.msra.mxu0 %v87
    %103 = vmatpush.msra.mxu0 %v86
    %104 = vmatpush.msra.mxu0 %v85
    %105 = vmatpush.msra.mxu0 %v84
    %106 = vmatpush.msra.mxu0 %v83
    %107 = vmatpush.msra.mxu0 %v82
    %108 = vmatpush.msra.mxu0 %v81
    %109 = vmatpush.msra.mxu0 %v80
    %110 = vmatpush.msra.mxu0 %v79
    %111 = vmatpush.msra.mxu0 %v78
    %112 = vmatpush.msra.mxu0 %v77
    %113 = vmatmul.f32.gmra.mxu0 %v76
    %v114 = vpop.f32.mrf.mxu0
    %v115 = vadd.f32 %v95, %v114
    %116 = vdwg.mxu0
    %v117 = vmax.f32 %v115, 0.0
    %v118 = vld [vmem:[%s5] sm:$0xff]
    %v119 = vld [vmem:[%s5 + $0x8] sm:$0xff]
    %v120 = vld [vmem:[%s5 + $0x10] sm:$0xff]
    %v121 = vld [vmem:[%s5 + $0x18] sm:$0xff]
    %v122 = vld [vmem:[%s5 + $0x20] sm:$0xff]
    %v123 = vld [vmem:[%s5 + $0x28] sm:$0xff]
    %v124 = vld [vmem:[%s5 + $0x30] sm:$0xff]
    %v125 = vld [vmem:[%s5 + $0x38] sm:$0xff]
    %v126 = vld [vmem:[%s5 + $0x40] sm:$0xff]
    %v127 = vld [vmem:[%s5 + $0x48] sm:$0xff]
    %v128 = vld [vmem:[%s5 + $0x50] sm:$0xff]
    %v129 = vld [vmem:[%s5 + $0x58] sm:$0xff]
    %v130 = vld [vmem:[%s5 + $0x60] sm:$0xff]
    %v131 = vld [vmem:[%s5 + $0x68] sm:$0xff]
    %v132 = vld [vmem:[%s5 + $0x70] sm:$0xff]
    %v133 = vld [vmem:[%s5 + $0x78] sm:$0xff]
    %v134 = vld [vmem:[%s6] sm:$0x1]
    %v136 = vperm.slane %v134, 0
    %138 = vmatpush.msra.mxu0 %v133
    %139 = vmatpush.msra.mxu0 %v132
    %140 = vmatpush.msra.mxu0 %v131
    %141 = vmatpush.msra.mxu0 %v130
    %142 = vmatpush.msra.mxu0 %v129
    %143 = vmatpush.msra.mxu0 %v128
    %144 = vmatpush.msra.mxu0 %v127
    %145 = vmatpush.msra.mxu0 %v126
    %146 = vmatpush.msra.mxu0 %v125
    %147 = vmatpush.msra.mxu0 %v124
    %148 = vmatpush.msra.mxu0 %v123
    %149 = vmatpush.msra.mxu0 %v122
    %150 = vmatpush.msra.mxu0 %v121
    %151 = vmatpush.msra.mxu0 %v120
    %152 = vmatpush.msra.mxu0 %v119
    %153 = vmatpush.msra.mxu0 %v118
    %154 = vmatmul.f32.gmra.mxu0 %v117
    %v155 = vpop.f32.mrf.mxu0
    %v156 = vadd.f32 %v136, %v155
    %157 = vdwg.mxu0
    %vm158 = vcmask 130048
    %v159 = vsel %vm158, %v156, -inf
    %160 = vmax.xlane.f32.xlu0 %v159
    %v161 = vpop.xlane.xlu0 %160
    %v162 = vsub.f32 %v156, %v161
    %v163 = vmul.f32 %v162, 1.442695
    %v164 = vpow.pop %v163
    %v165 = vsel %vm158, %v164, 0.0
    %166 = vadd.xlane.f32.xlu0 %v165
    %v167 = vpop.xlane.xlu0 %166
    %v168 = vrcp.pop %v167
    %v169 = vmul.f32 %v167, %v168
    %v170 = vsub.f32 1.0, %v169
    %v171 = vmul.f32 %v168, %v170
    %v172 = vadd.f32 %v168, %v171
    %vm173 = vweird.f32 %v167
    %vm174 = vweird.f32 %v168
    %vm175 = vmor %vm173, %vm174
    %v176 = vsel %vm175, %v168, %v172
    %v177 = vand.u32 2147483647, %v167
    %vm178 = vcmp.eq.f32.partialorder %v177, 8.507059e+37
    %v179 = vand.u32 %v167, 2147483648
    %v180 = vor.u32 1.1754944e-38, %v179
    %v181 = vsel %vm178, %v180, %v176
    %v182 = vmul.f32 %v164, %v181
    %183 = vst.msk [vmem:[#allocation5] sm:$0xff] %vm158, %v182
    // Predicated region
    $region34: #{tpu_custom_call.1} parent=1 // pred_check
      _
    $region35: #{tpu_custom_call.1} parent=1 // pred_check_branch
      %185 = sbr.rel (0) target = $region37
    $region36: #{tpu_custom_call.1} parent=1 // pred_region
      %187 = vsyncadd [#allocation4], 0
      %s189 = sshll.u32 [#allocation5], 4
      %s190 = int_to_ptr.vmem [resolvable:$true] %s189
      %s191 = sshll.u32 %s7, 4
      %s192 = int_to_ptr.hbm [resolvable:$true] %s191
      %194 = dma.vmem_to_hbm [thread:$0]  %s190, 128, %s192, [#allocation4]
    $region37: #{tpu_custom_call.1} parent=1 // pred_fallthru
      _
    // Predicated region
    $region38: #{tpu_custom_call.1} parent=1 // pred_check
      _
    $region39: #{tpu_custom_call.1} parent=1 // pred_check_branch
      %196 = sbr.rel (0) target = $region41
    $region40: #{tpu_custom_call.1} parent=1 // pred_region
      %198 = dma.done [#allocation4], 128
    $region41: #{tpu_custom_call.1} parent=1 // pred_fallthru
      _
    %199 = vsyncpa [#allocation3], 1
    %200 = vsyncpa [#allocation4], 1

</llo_original>
